<compile_context>
chip_gen: v5e
topology: v5e:2x2
jax: 0.10.0
libtpu: 0.0.40
codegen_flags: <defaults>
</compile_context>

<pallas_src>
import functools

import jax
import jax.numpy as jnp
from jax import lax
from jax.experimental import pallas as pl
from jax.experimental.pallas import tpu as pltpu

_LANE = 128
_NEG_INF = -1e30  # finite "minus infinity" used to pre-mask padded vocab cols


def _round_up(x: int, m: int) -> int:
    return ((x + m - 1) // m) * m


def _pick_vmem_limit_bytes() -> int:
    """~Half of physical VMEM per core (64 MiB on v5e/v6e, 32 MiB on v7x)."""
    default = 32 * 1024 * 1024
    try:
        info = pltpu.get_tpu_info()
        cap = getattr(info, "vmem_capacity_bytes", None)
        if cap:
            return int(max(default, min(cap // 2, 64 * 1024 * 1024)))
    except Exception:
        pass
    return default


def _tile_rows(bt: int, tile_bt_max: int) -> int:
    # Big tiles amortize the ~0.35us per-step overhead; cap at ceil(BT/2) so
    # the "parallel" grid axis has >= 2 steps for v7x's two TensorCores.
    half = _round_up((bt + 1) // 2, 8)
    return max(8, min(tile_bt_max, half))


def _logits_kernel(idx_ref, table_ref, logits_ref):
    """Embedding gather as a one-hot matmul (inference path, no loss work)."""
    tile_bt = idx_ref.shape[-1]
    v_pad = table_ref.shape[0]
    idx_row = idx_ref[...]                                      # (1, tile_bt) int32
    vocab_rows = lax.broadcasted_iota(jnp.int32, (v_pad, tile_bt), 0)
    onehot_t = (vocab_rows == idx_row).astype(jnp.float32)      # (v_pad, tile_bt)
    # logits[i, :] = table[idx[i], :]  (contract the vocab-row dim of both)
    logits_ref[...] = lax.dot_general(
        onehot_t, table_ref[...],
        dimension_numbers=(((0,), (0,)), ((), ())),
        preferred_element_type=jnp.float32)                     # (tile_bt, v_pad)


def _loss_kernel(idx_ref, tgt_ref, table_ref, logits_ref, loss_ref, *, bt_actual):
    """Embedding gather + per-tile cross-entropy partial sum (training path)."""
    tile_bt = idx_ref.shape[-1]
    v_pad = table_ref.shape[0]
    idx_row = idx_ref[...]                                      # (1, tile_bt) int32
    tgt_col = tgt_ref[...]                                      # (tile_bt, 1) int32

    vocab_rows = lax.broadcasted_iota(jnp.int32, (v_pad, tile_bt), 0)
    onehot_t = (vocab_rows == idx_row).astype(jnp.float32)      # (v_pad, tile_bt)

    # Single MXU matmul: gather the table rows, lane-dense (tile_bt, v_pad).
    logits = lax.dot_general(
        onehot_t, table_ref[...],
        dimension_numbers=(((0,), (0,)), ((), ())),
        preferred_element_type=jnp.float32)
    logits_ref[...] = logits

    # Cross-entropy with axis=-1 (lane) reductions.  Padded vocab columns were
    # pre-filled with -1e30 in the wrapper, so exp() underflows to 0 and no
    # in-kernel vocab mask is needed.
    m = jnp.max(logits, axis=-1, keepdims=True)                 # (tile_bt, 1)
    s = jnp.sum(jnp.exp(logits - m), axis=-1, keepdims=True)    # (tile_bt, 1)
    lse = m + jnp.log(s)                                        # (tile_bt, 1)

    vocab_cols = lax.broadcasted_iota(jnp.int32, (tile_bt, v_pad), 1)
    onehot_tgt = vocab_cols == tgt_col                          # (tile_bt, v_pad)
    tgt_logit = jnp.sum(jnp.where(onehot_tgt, logits, 0.0),
                        axis=-1, keepdims=True)                 # (tile_bt, 1)

    # Mask padded batch rows out of the partial loss sum.
    row_ids = (lax.broadcasted_iota(jnp.int32, (tile_bt, 1), 0)
               + pl.program_id(0) * tile_bt)
    per_row = jnp.where(row_ids < bt_actual, lse - tgt_logit, 0.0)

    # Lane-dense (1, 128) partial store; wrapper reads lane 0 of each tile.
    tile_loss = jnp.sum(per_row, axis=0, keepdims=True)         # (1, 1)
    loss_ref[...] = jnp.broadcast_to(tile_loss, (1, _LANE))


def bigram_forward(table, idx, targets=None, *, tile_bt_max=2048):
    """Mirrors BigramLanguageModel.forward.

    idx: (B, T) int32, targets: (B, T) int32 or None.
    Returns (logits, loss):
      - targets is None: logits has shape (B, T, V), loss is None
      - otherwise:       logits has shape (B*T, V), loss is a scalar
    """
    B, T = idx.shape
    V = table.shape[0]
    V_pad = _round_up(V, _LANE)
    BT = B * T
    tile_bt = _tile_rows(BT, tile_bt_max)
    BT_pad = _round_up(BT, tile_bt)
    num_tiles = BT_pad // tile_bt

    # Pre-mask padded vocab columns with a finite -inf (hoisted out of the
    # kernel).  Padded rows are never selected by the one-hot, so keep them 0.
    table_f32 = table.astype(jnp.float32)
    table_pad = jnp.pad(table_f32, ((0, 0), (0, V_pad - V)),
                        constant_values=_NEG_INF)
    table_pad = jnp.pad(table_pad, ((0, V_pad - V), (0, 0)))

    idx_flat = idx.reshape(-1).astype(jnp.int32)
    idx_tiles = jnp.pad(idx_flat, (0, BT_pad - BT)).reshape(num_tiles, 1, tile_bt)

    idx_spec = pl.BlockSpec((None, 1, tile_bt), lambda i: (i, 0, 0))
    table_spec = pl.BlockSpec((V_pad, V_pad), lambda i: (0, 0))   # resident
    logits_spec = pl.BlockSpec((tile_bt, V_pad), lambda i: (i, 0))
    compiler_params = pltpu.CompilerParams(
        dimension_semantics=("parallel",),          # shards across v7x's 2 TCs
        vmem_limit_bytes=_pick_vmem_limit_bytes())

    if targets is None:
        cost = pl.CostEstimate(
            flops=2 * BT_pad * V_pad * V_pad,
            transcendentals=0,
            bytes_accessed=4 * (V_pad * V_pad + BT_pad + BT_pad * V_pad))
        logits_pad = pl.pallas_call(
            _logits_kernel,
            grid=(num_tiles,),
            in_specs=[idx_spec, table_spec],
            out_specs=logits_spec,
            out_shape=jax.ShapeDtypeStruct((BT_pad, V_pad), jnp.float32),
            compiler_params=compiler_params,
            cost_estimate=cost,
        )(idx_tiles, table_pad)
        return logits_pad[:BT, :V].reshape(B, T, V), None

    tgt_flat = targets.reshape(-1).astype(jnp.int32)
    tgt_col = jnp.pad(tgt_flat, (0, BT_pad - BT)).reshape(BT_pad, 1)
    tgt_spec = pl.BlockSpec((tile_bt, 1), lambda i: (i, 0))

    kernel = functools.partial(_loss_kernel, bt_actual=BT)
    cost = pl.CostEstimate(
        flops=2 * BT_pad * V_pad * V_pad + 8 * BT_pad * V_pad,
        transcendentals=BT_pad * (V_pad + 1),
        bytes_accessed=4 * (V_pad * V_pad + 2 * BT_pad
                            + BT_pad * V_pad + num_tiles * _LANE))
    logits_pad, loss_parts = pl.pallas_call(
        kernel,
        grid=(num_tiles,),
        in_specs=[idx_spec, tgt_spec, table_spec],
        out_specs=(logits_spec,
                   pl.BlockSpec((None, 1, _LANE), lambda i: (i, 0, 0))),
        out_shape=(jax.ShapeDtypeStruct((BT_pad, V_pad), jnp.float32),
                   jax.ShapeDtypeStruct((num_tiles, 1, _LANE), jnp.float32)),
        compiler_params=compiler_params,
        cost_estimate=cost,
    )(idx_tiles, tgt_col, table_pad)
    logits = logits_pad[:BT, :V]
    loss = jnp.sum(loss_parts[:, 0, 0]) / BT
    return logits, loss


if __name__ == "__main__":
    # Deterministic parameter init: nn.Embedding(vocab_size, vocab_size) ~ N(0,1).
    vocab_size = 65          # e.g. tiny-Shakespeare character vocab
    B, T = 2, 8

    key = jax.random.PRNGKey(0)
    k_table, k_idx, k_tgt = jax.random.split(key, 3)
    table = jax.random.normal(k_table, (vocab_size, vocab_size), jnp.float32)
    idx = jax.random.randint(k_idx, (B, T), 0, vocab_size, jnp.int32)
    targets = jax.random.randint(k_tgt, (B, T), 0, vocab_size, jnp.int32)

    # Path with targets (logits reshaped to (B*T, V), mean cross-entropy loss).
    logits, loss = bigram_forward(table, idx, targets)
    jax.block_until_ready((logits, loss))

    # Path without targets (logits shape (B, T, V), loss is None).
    logits_nt, loss_nt = bigram_forward(table, idx, None)
    jax.block_until_ready(logits_nt)

    # Pure-JAX reference check.
    ref_logits = table[idx.reshape(-1)]                              # (B*T, V)
    ref_lse = jax.nn.logsumexp(ref_logits, axis=-1)
    ref_tgt = jnp.take_along_axis(
        ref_logits, targets.reshape(-1, 1), axis=-1)[:, 0]
    ref_loss = jnp.mean(ref_lse - ref_tgt)

    assert logits.shape == (B * T, vocab_size)
    assert logits_nt.shape == (B, T, vocab_size)
    assert loss_nt is None
    assert jnp.allclose(logits, ref_logits, atol=1e-5)
    assert jnp.allclose(logits_nt.reshape(B * T, vocab_size), ref_logits,
                        atol=1e-5)
    assert jnp.allclose(loss, ref_loss, atol=1e-5)

    print("KERNEL_OK")
</pallas_src>

<mosaic_0001>
module attributes {stable_mosaic.version = 11 : i64} {
  func.func @_loss_kernel(%arg0: i32, %arg1: memref<1x1x8xi32, #tpu.memory_space<vmem>>, %arg2: memref<8x1xi32, #tpu.memory_space<vmem>>, %arg3: memref<128x128xf32, #tpu.memory_space<vmem>>, %arg4: memref<8x128xf32, #tpu.memory_space<vmem>>, %arg5: memref<1x1x128xf32, #tpu.memory_space<vmem>>) attributes {dimension_semantics = [#tpu.dimension_semantics<parallel>], iteration_bounds = array<i64: 2>, scalar_prefetch = 0 : i64, scratch_operands = 0 : i64, tpu.core_type = #tpu.core_type<tc>, window_params = [{transform_indices = @transform_0, window_bounds = array<i64: 1, 1, 8>}, {transform_indices = @transform_1, window_bounds = array<i64: 8, 1>}, {pipeline_mode = #tpu.pipeline_mode<synchronous>, transform_indices = @transform_2, window_bounds = array<i64: 128, 128>}, {transform_indices = @transform_3, window_bounds = array<i64: 8, 128>}, {transform_indices = @transform_4, window_bounds = array<i64: 1, 1, 128>}]} {
    %c0 = arith.constant 0 : index
    %c0_0 = arith.constant 0 : index
    %c0_1 = arith.constant 0 : index
    %0 = vector.load %arg1[%c0, %c0_0, %c0_1] : memref<1x1x8xi32, #tpu.memory_space<vmem>>, vector<1x1x8xi32>
    %1 = vector.shape_cast %0 : vector<1x1x8xi32> to vector<1x8xi32>
    %c0_2 = arith.constant 0 : index
    %c0_3 = arith.constant 0 : index
    %2 = vector.load %arg2[%c0_2, %c0_3] : memref<8x1xi32, #tpu.memory_space<vmem>>, vector<8x1xi32>
    %3 = tpu.iota {dimensions = array<i32: 0>} : vector<128x8xi32>
    %4 = vector.broadcast %1 : vector<1x8xi32> to vector<128x8xi32>
    %5 = arith.cmpi eq, %3, %4 : vector<128x8xi32>
    %6 = arith.extui %5 : vector<128x8xi1> to vector<128x8xi32>
    %7 = arith.sitofp %6 : vector<128x8xi32> to vector<128x8xf32>
    %c0_4 = arith.constant 0 : index
    %c0_5 = arith.constant 0 : index
    %8 = vector.load %arg3[%c0_4, %c0_5] : memref<128x128xf32, #tpu.memory_space<vmem>>, vector<128x128xf32>
    %cst = arith.constant dense<0.000000e+00> : vector<8x128xf32>
    %9 = tpu.matmul %7, %8, %cst {dimension_numbers = #tpu.dot_dimension_numbers<[0], [0], [1], [1], [0, 1, 1, 1], [], []>} : vector<128x8xf32>, vector<128x128xf32>, vector<8x128xf32> -> vector<8x128xf32>
    %c0_6 = arith.constant 0 : index
    %c0_7 = arith.constant 0 : index
    %10 = vector.load %arg4[%c0_6, %c0_7] : memref<8x128xf32, #tpu.memory_space<vmem>>, vector<8x128xf32>
    tpu.vector_store %arg4[%c0_6, %c0_7], %9 {strides = array<i32>} : memref<8x128xf32, #tpu.memory_space<vmem>>, vector<8x128xf32>,
    %cst_8 = arith.constant dense<0xFF800000> : vector<8xf32>
    %11 = vector.multi_reduction <maximumf>, %9, %cst_8 [1] : vector<8x128xf32> to vector<8xf32>
    %12 = vector.shape_cast %11 : vector<8xf32> to vector<8x1xf32>
    %13 = vector.broadcast %12 : vector<8x1xf32> to vector<8x128xf32>
    %14 = arith.subf %9, %13 : vector<8x128xf32>
    %15 = math.exp %14 : vector<8x128xf32>
    %cst_9 = arith.constant dense<0.000000e+00> : vector<8xf32>
    %16 = vector.multi_reduction <add>, %15, %cst_9 [1] : vector<8x128xf32> to vector<8xf32>
    %17 = vector.shape_cast %16 : vector<8xf32> to vector<8x1xf32>
    %18 = math.log %17 : vector<8x1xf32>
    %19 = arith.addf %12, %18 : vector<8x1xf32>
    %20 = tpu.iota {dimensions = array<i32: 1>} : vector<8x128xi32>
    %21 = vector.broadcast %2 : vector<8x1xi32> to vector<8x128xi32>
    %22 = arith.cmpi eq, %20, %21 : vector<8x128xi32>
    %cst_10 = arith.constant 0.000000e+00 : f32
    %23 = vector.broadcast %cst_10 : f32 to vector<8x128xf32>
    %24 = arith.select %22, %9, %23 : vector<8x128xi1>, vector<8x128xf32>
    %cst_11 = arith.constant dense<0.000000e+00> : vector<8xf32>
    %25 = vector.multi_reduction <add>, %24, %cst_11 [1] : vector<8x128xf32> to vector<8xf32>
    %26 = vector.shape_cast %25 : vector<8xf32> to vector<8x1xf32>
    %27 = tpu.iota {dimensions = array<i32: 0>} : vector<8x1xi32>
    %c8_i32 = arith.constant 8 : i32
    %28 = arith.muli %arg0, %c8_i32 : i32
    %29 = vector.broadcast %28 : i32 to vector<8x1xi32>
    %30 = arith.addi %27, %29 : vector<8x1xi32>
    %c16_i32 = arith.constant 16 : i32
    %31 = vector.broadcast %c16_i32 : i32 to vector<8x1xi32>
    %32 = arith.cmpi slt, %30, %31 : vector<8x1xi32>
    %33 = arith.subf %19, %26 : vector<8x1xf32>
    %cst_12 = arith.constant 0.000000e+00 : f32
    %34 = vector.broadcast %cst_12 : f32 to vector<8x1xf32>
    %35 = arith.select %32, %33, %34 : vector<8x1xi1>, vector<8x1xf32>
    %cst_13 = arith.constant dense<0.000000e+00> : vector<1xf32>
    %36 = vector.multi_reduction <add>, %35, %cst_13 [0] : vector<8x1xf32> to vector<1xf32>
    %37 = vector.shape_cast %36 : vector<1xf32> to vector<1x1xf32>
    %38 = vector.shape_cast %37 : vector<1x1xf32> to vector<1x1xf32>
    %39 = vector.broadcast %38 : vector<1x1xf32> to vector<1x128xf32>
    %c0_14 = arith.constant 0 : index
    %c0_15 = arith.constant 0 : index
    %c0_16 = arith.constant 0 : index
    %40 = vector.load %arg5[%c0_14, %c0_15, %c0_16] : memref<1x1x128xf32, #tpu.memory_space<vmem>>, vector<1x1x128xf32>
    %41 = vector.shape_cast %40 : vector<1x1x128xf32> to vector<1x128xf32>
    %42 = vector.shape_cast %39 : vector<1x128xf32> to vector<1x1x128xf32>
    tpu.vector_store %arg5[%c0_14, %c0_15, %c0_16], %42 {strides = array<i32>} : memref<1x1x128xf32, #tpu.memory_space<vmem>>, vector<1x1x128xf32>,
    return
  }
  func.func @transform_0(%arg0: i32) -> (i32, i32, i32) {
    %c0_i32 = arith.constant 0 : i32
    %c0_i32_0 = arith.constant 0 : i32
    %c0_i32_1 = arith.constant 0 : i32
    return %arg0, %c0_i32, %c0_i32_0 : i32, i32, i32
  }
  func.func @transform_1(%arg0: i32) -> (i32, i32) {
    %c0_i32 = arith.constant 0 : i32
    %c0_i32_0 = arith.constant 0 : i32
    return %arg0, %c0_i32 : i32, i32
  }
  func.func @transform_2(%arg0: i32) -> (i32, i32) {
    %c0_i32 = arith.constant 0 : i32
    %c0_i32_0 = arith.constant 0 : i32
    %c0_i32_1 = arith.constant 0 : i32
    return %c0_i32, %c0_i32_0 : i32, i32
  }
  func.func @transform_3(%arg0: i32) -> (i32, i32) {
    %c0_i32 = arith.constant 0 : i32
    %c0_i32_0 = arith.constant 0 : i32
    return %arg0, %c0_i32 : i32, i32
  }
  func.func @transform_4(%arg0: i32) -> (i32, i32, i32) {
    %c0_i32 = arith.constant 0 : i32
    %c0_i32_0 = arith.constant 0 : i32
    %c0_i32_1 = arith.constant 0 : i32
    return %arg0, %c0_i32, %c0_i32_0 : i32, i32, i32
  }
}

</mosaic_0001>

<llo_original>
// kernel: tpu_custom_call.1
$region0: #{tpu_custom_call.1}
  #allocation0 [shape = 'u32[]', space=smem, size = 0x4, offset = 0x4, fixed_abs, tag = 'smem constant byte address 0x4 - core index']
  #allocation1 [shape = 'u32[72,128]{1,0:T(1,128)}', space=vmem, size = 0x9000, scoped, tag = 'internal scratch']
  %s0 = inlined_call_operand.vmem [shape: s32[2,1,8], index: 0, kind: input, shape index: {}]
  %s1 = inlined_call_operand.vmem [shape: s32[16,1], index: 1, kind: input, shape index: {}]
  %s2 = inlined_call_operand.hbm [shape: f32[128,128], index: 2, kind: input, shape index: {}]
  %s3 = inlined_call_operand.hbm [shape: f32[16,128], index: 3, kind: output, shape index: {0}]
  %s4 = inlined_call_operand.hbm [shape: f32[2,1,128], index: 4, kind: output, shape index: {1}]
  %5 = xla_tuple %s3, %s4
  %s6 = sld [smem:[#allocation0]]
  $region57: #{tpu_custom_call.1} parent=0
    _
  %s8 = ssub.s32 1, %s6
  %s9 = scalar_select 0, %s8, %s6
  $region1: #{tpu_custom_call.1} parent=0
    #allocation2 [shape = 'u8[65536]{0}', space=vmem, size = 0x10000, scoped, tag = 'input window, operand 2, single buffered']
    #allocation3 [shape = 's32[2]{0}', space=sflag, size = 0x8, scoped, tag = 'scoped memory for tpu_custom_call.1']
    #allocation4 [shape = 's32[2]{0}', space=sflag, size = 0x8, scoped, tag = 'scoped memory for tpu_custom_call.1']
    #allocation5 [shape = 'u8[8192]{0}', space=vmem, size = 0x2000, scoped, tag = 'output window, operand 0']
    #allocation6 [shape = 'u8[1024]{0}', space=vmem, size = 0x400, scoped, tag = 'output window, operand 1']
    #allocation7 [shape = 's32[2]{0}', space=sflag, size = 0x8, scoped, tag = 'scoped memory for tpu_custom_call.1']
    %10 = vsyncpa [#allocation3], 0
    %11 = vsyncpa [#allocation4], 0
    %s12 = scalar_lea.sflag [#allocation4], 1
    %13 = vsyncpa %s12, 0
    %14 = vsyncpa [#allocation7], 0
    %s15 = scalar_lea.sflag [#allocation7], 1
    %16 = vsyncpa %s15, 0
    loop: start=0, step=1, limit=4
    $region2: #{tpu_custom_call.1} parent=1 // loop_pre_header
      _
    $region3: #{tpu_custom_call.1} parent=1 // loop_header
      %s18 = sphi 0, %s22
      %p19 = scmp.ge.s32.totalorder %s18, 4
      %s28 = sphi 0, %s30
      %s31 = sphi 0, %s28
      %s32 = sphi 0, %s31
      %s48 = sphi 0, %s32
      %s54 = sphi 0, %s56
      %s57 = sphi 0, %s54
      %s58 = sphi 0, %s57
      %s74 = sphi 0, %s58
      %s78 = sphi 0, %s78
      %s80 = sphi 0, %s78
      %s81 = sphi 0, %s80
      %s95 = sphi 0, %s81
      %s101 = sphi 0, %s103
      %s104 = sphi 0, %s101
      %s105 = sphi 0, %s104
      %s121 = sphi 0, %s105
      %s127 = sphi 0, %s129
      %s130 = sphi 0, %s127
      %s131 = sphi 0, %s130
      %s147 = sphi 0, %s131
    $region4: #{tpu_custom_call.1} parent=1 // loop_header_branch
      %21 = sbr.rel (%p19) target = $region8
    $region5: #{tpu_custom_call.1} parent=1 // loop_body
      %s23 = ssub.s32 %s18, 1
      %s24 = ssub.s32 %s18, 2
      %s25 = sadd.s32 %s18, 1
      %s26 = ssub.s32 %s18, %s25
      %p27 = scmp.eq.s32.totalorder %s26, 0
      %s29 = sadd.s32 %s28, 1
      %s30 = scalar_select %p27, %s28, %s29
      %p33 = pneg %p27
      %p34 = scmp.eq.s32.totalorder %s18, 1
      %p35 = por %p33, %p34
      %p36 = scmp.ne.s32.totalorder %s28, %s31
      %p37 = scmp.eq.s32.totalorder %s18, 0
      %p38 = por %p36, %p37
      %p39 = scmp.ne.s32.totalorder %s28, %s31
      %p40 = scmp.eq.s32.totalorder %s23, 1
      %p41 = por %p39, %p40
      %p42 = scmp.ne.s32.totalorder %s31, %s32
      %p43 = scmp.eq.s32.totalorder %s23, 0
      %p44 = por %p42, %p43
      %p45 = scmp.ne.s32.totalorder %s31, %s32
      %p46 = scmp.eq.s32.totalorder %s24, 1
      %p47 = por %p45, %p46
      %p49 = scmp.ne.s32.totalorder %s32, %s48
      %p50 = scmp.eq.s32.totalorder %s24, 0
      %p51 = por %p49, %p50
      %s52 = ssub.s32 %s18, %s25
      %p53 = scmp.eq.s32.totalorder %s52, 0
      %s55 = sadd.s32 %s54, 1
      %s56 = scalar_select %p53, %s54, %s55
      %p59 = pneg %p53
      %p60 = scmp.eq.s32.totalorder %s18, 1
      %p61 = por %p59, %p60
      %p62 = scmp.ne.s32.totalorder %s54, %s57
      %p63 = scmp.eq.s32.totalorder %s18, 0
      %p64 = por %p62, %p63
      %p65 = scmp.ne.s32.totalorder %s54, %s57
      %p66 = scmp.eq.s32.totalorder %s23, 1
      %p67 = por %p65, %p66
      %p68 = scmp.ne.s32.totalorder %s57, %s58
      %p69 = scmp.eq.s32.totalorder %s23, 0
      %p70 = por %p68, %p69
      %p71 = scmp.ne.s32.totalorder %s57, %s58
      %p72 = scmp.eq.s32.totalorder %s24, 1
      %p73 = por %p71, %p72
      %p75 = scmp.ne.s32.totalorder %s58, %s74
      %p76 = scmp.eq.s32.totalorder %s24, 0
      %p77 = por %p75, %p76
      %s79 = sadd.s32 %s78, 1
      %p82 = scmp.eq.s32.totalorder %s18, 1
      %p83 = scmp.ne.s32.totalorder %s78, %s80
      %p84 = scmp.eq.s32.totalorder %s18, 0
      %p85 = por %p83, %p84
      %p86 = scmp.ne.s32.totalorder %s78, %s80
      %p87 = scmp.eq.s32.totalorder %s23, 1
      %p88 = por %p86, %p87
      %p89 = scmp.ne.s32.totalorder %s80, %s81
      %p90 = scmp.eq.s32.totalorder %s23, 0
      %p91 = por %p89, %p90
      %p92 = scmp.ne.s32.totalorder %s80, %s81
      %p93 = scmp.eq.s32.totalorder %s24, 1
      %p94 = por %p92, %p93
      %p96 = scmp.ne.s32.totalorder %s81, %s95
      %p97 = scmp.eq.s32.totalorder %s24, 0
      %p98 = por %p96, %p97
      %s99 = ssub.s32 %s18, %s25
      %p100 = scmp.eq.s32.totalorder %s99, 0
      %s102 = sadd.s32 %s101, 1
      %s103 = scalar_select %p100, %s101, %s102
      %p106 = pneg %p100
      %p107 = scmp.eq.s32.totalorder %s18, 1
      %p108 = por %p106, %p107
      %p109 = scmp.ne.s32.totalorder %s101, %s104
      %p110 = scmp.eq.s32.totalorder %s18, 0
      %p111 = por %p109, %p110
      %p112 = scmp.ne.s32.totalorder %s101, %s104
      %p113 = scmp.eq.s32.totalorder %s23, 1
      %p114 = por %p112, %p113
      %p115 = scmp.ne.s32.totalorder %s104, %s105
      %p116 = scmp.eq.s32.totalorder %s23, 0
      %p117 = por %p115, %p116
      %p118 = scmp.ne.s32.totalorder %s104, %s105
      %p119 = scmp.eq.s32.totalorder %s24, 1
      %p120 = por %p118, %p119
      %p122 = scmp.ne.s32.totalorder %s105, %s121
      %p123 = scmp.eq.s32.totalorder %s24, 0
      %p124 = por %p122, %p123
      %s125 = ssub.s32 %s18, %s25
      %p126 = scmp.eq.s32.totalorder %s125, 0
      %s128 = sadd.s32 %s127, 1
      %s129 = scalar_select %p126, %s127, %s128
      %p132 = pneg %p126
      %p133 = scmp.eq.s32.totalorder %s18, 1
      %p134 = por %p132, %p133
      %p135 = scmp.ne.s32.totalorder %s127, %s130
      %p136 = scmp.eq.s32.totalorder %s18, 0
      %p137 = por %p135, %p136
      %p138 = scmp.ne.s32.totalorder %s127, %s130
      %p139 = scmp.eq.s32.totalorder %s23, 1
      %p140 = por %p138, %p139
      %p141 = scmp.ne.s32.totalorder %s130, %s131
      %p142 = scmp.eq.s32.totalorder %s23, 0
      %p143 = por %p141, %p142
      %p144 = scmp.ne.s32.totalorder %s130, %s131
      %p145 = scmp.eq.s32.totalorder %s24, 1
      %p146 = por %p144, %p145
      %p148 = scmp.ne.s32.totalorder %s131, %s147
      %p149 = scmp.eq.s32.totalorder %s24, 0
      %p150 = por %p148, %p149
      %p151 = scmp.le.s32.totalorder 1, %s18
      %p152 = scmp.lt.s32.totalorder %s18, 3
      %p153 = pnand %p151, %p152
      %p154 = pneg %p153
      // Predicated region
      $region9: #{tpu_custom_call.1} parent=5 // pred_check
        _
      $region10: #{tpu_custom_call.1} parent=5 // pred_check_branch
        %156 = sbr.rel (%p153) target = $region12
      $region11: #{tpu_custom_call.1} parent=5 // pred_region
        %s157 = ssub.s32 %s18, 1
        // Predicated region
        $region13: #{tpu_custom_call.1} parent=11 // pred_check
          %p158 = pneg %p91
        $region14: #{tpu_custom_call.1} parent=11 // pred_check_branch
          %160 = sbr.rel (%p158) target = $region16
        $region15: #{tpu_custom_call.1} parent=11 // pred_region
          %162 = vsyncadd [#allocation3], 0
          %s163 = sshll.u32 %s2, 4
          %s164 = int_to_ptr.hbm [resolvable:$true] %s163
          %s165 = sshll.u32 [#allocation2], 4
          %s166 = int_to_ptr.vmem [resolvable:$true] %s165
          %171 = dma.hbm_to_vmem [thread:$0]  %s164, 2048, %s166, [#allocation3], 128, 128, 8
        $region16: #{tpu_custom_call.1} parent=11 // pred_fallthru
          _
      $region12: #{tpu_custom_call.1} parent=5 // pred_fallthru
        _
      %p172 = scmp.lt.s32.totalorder %s18, 2
      // Predicated region
      $region17: #{tpu_custom_call.1} parent=5 // pred_check
        %p173 = pneg %p172
      $region18: #{tpu_custom_call.1} parent=5 // pred_check_branch
        %175 = sbr.rel (%p173) target = $region20
      $region19: #{tpu_custom_call.1} parent=5 // pred_region
        // Predicated region
        $region21: #{tpu_custom_call.1} parent=19 // pred_check
          %p176 = pneg %p38
        $region22: #{tpu_custom_call.1} parent=19 // pred_check_branch
          %178 = sbr.rel (%p176) target = $region24
        $region23: #{tpu_custom_call.1} parent=19 // pred_region
          %p179 = scmp.lt.s32.totalorder %s18, 1
          %s180 = scalar_select %p179, %s18, 1
          %s181 = scalar_lea.vmem %s0, %s180
        $region24: #{tpu_custom_call.1} parent=19 // pred_fallthru
          _
        // Predicated region
        $region25: #{tpu_custom_call.1} parent=19 // pred_check
          %p182 = pneg %p64
        $region26: #{tpu_custom_call.1} parent=19 // pred_check_branch
          %184 = sbr.rel (%p182) target = $region28
        $region27: #{tpu_custom_call.1} parent=19 // pred_region
          %p185 = scmp.lt.s32.totalorder %s18, 1
          %s186 = scalar_select %p185, %s18, 1
          %s187 = smul.addr %s186, 8
          %s188 = scalar_lea.vmem %s1, %s187
        $region28: #{tpu_custom_call.1} parent=19 // pred_fallthru
          _
      $region20: #{tpu_custom_call.1} parent=5 // pred_fallthru
        _
      %p189 = scmp.le.s32.totalorder 1, %s18
      %p190 = scmp.lt.s32.totalorder %s18, 3
      %p191 = pnand %p189, %p190
      %p192 = pneg %p191
      // Predicated region
      $region29: #{tpu_custom_call.1} parent=5 // pred_check
        _
      $region30: #{tpu_custom_call.1} parent=5 // pred_check_branch
        %194 = sbr.rel (%p191) target = $region32
      $region31: #{tpu_custom_call.1} parent=5 // pred_region
        %s195 = ssub.s32 %s18, 1
        // Predicated region
        $region33: #{tpu_custom_call.1} parent=31 // pred_check
          %p196 = pneg %p91
        $region34: #{tpu_custom_call.1} parent=31 // pred_check_branch
          %198 = sbr.rel (%p196) target = $region36
        $region35: #{tpu_custom_call.1} parent=31 // pred_region
          %200 = dma.done [#allocation3], 2048
        $region36: #{tpu_custom_call.1} parent=31 // pred_fallthru
          _
        %p201 = scmp.lt.s32.totalorder %s23, 1
        %s202 = scalar_select %p201, %s23, 1
        %s203 = scalar_lea.vmem %s0, %s202
        %p204 = pneg %p44
        %p205 = pneg %p41
        %p206 = scmp.lt.s32.totalorder %s23, 1
        %s207 = scalar_select %p206, %s23, 1
        %s208 = smul.addr %s207, 8
        %s209 = scalar_lea.vmem %s1, %s208
        %p210 = pneg %p70
        %p211 = pneg %p67
        %p212 = pneg %p91
        %p213 = pneg %p88
        %p214 = pneg %p117
        %p215 = pneg %p114
        %s216 = sand.u32 %s104, 1
        %s217 = scalar_lea.sflag [#allocation4], %s216
        %s218 = sand.u32 %s104, 1
        %s219 = smul.addr %s218, 8
        %s220 = scalar_lea.vmem [#allocation5], %s219
        %p221 = pneg %p143
        %p222 = pneg %p140
        %s223 = sand.u32 %s130, 1
        %s224 = scalar_lea.sflag [#allocation7], %s223
        %s225 = sand.u32 %s130, 1
        %s226 = scalar_lea.vmem [#allocation6], %s225
        %p227 = scmp.lt.s32.totalorder %s23, 1
        %s228 = scalar_select %p227, %s23, 1
        %s229 = scalar_lea.vmem %s0, %s228
        %p230 = scmp.lt.s32.totalorder %s23, 1
        %s231 = scalar_select %p230, %s23, 1
        %s232 = smul.addr %s231, 8
        %s233 = scalar_lea.vmem %s1, %s232
        %v234 = vld [vmem:[%s229] sm:$0x1]
        %v235 = vld [vmem:[%s233] sm:$0xff]
        %v236 = vlaneseq
        %v237 = vshrl.u32 %v236, 7
        %v238 = vadd.s32 %v237, 8
        %v239 = vadd.s32 %v237, 16
        %v240 = vadd.s32 %v237, 24
        %v241 = vadd.s32 %v237, 32
        %v242 = vadd.s32 %v237, 40
        %v243 = vadd.s32 %v237, 48
        %v244 = vadd.s32 %v237, 56
        %v245 = vadd.s32 %v237, 64
        %v246 = vadd.s32 %v237, 72
        %v247 = vadd.s32 %v237, 80
        %v248 = vadd.s32 %v237, 88
        %v249 = vadd.s32 %v237, 96
        %v250 = vadd.s32 %v237, 104
        %v251 = vadd.s32 %v237, 112
        %v252 = vadd.s32 %v237, 120
        %v253 = vperm.slane %v234, 0
        %vm254 = vcmp.eq.s32.totalorder %v237, %v253
        %vm255 = vcmp.eq.s32.totalorder %v238, %v253
        %vm256 = vcmp.eq.s32.totalorder %v239, %v253
        %vm257 = vcmp.eq.s32.totalorder %v240, %v253
        %vm258 = vcmp.eq.s32.totalorder %v241, %v253
        %vm259 = vcmp.eq.s32.totalorder %v242, %v253
        %vm260 = vcmp.eq.s32.totalorder %v243, %v253
        %vm261 = vcmp.eq.s32.totalorder %v244, %v253
        %vm262 = vcmp.eq.s32.totalorder %v245, %v253
        %vm263 = vcmp.eq.s32.totalorder %v246, %v253
        %vm264 = vcmp.eq.s32.totalorder %v247, %v253
        %vm265 = vcmp.eq.s32.totalorder %v248, %v253
        %vm266 = vcmp.eq.s32.totalorder %v249, %v253
        %vm267 = vcmp.eq.s32.totalorder %v250, %v253
        %vm268 = vcmp.eq.s32.totalorder %v251, %v253
        %vm269 = vcmp.eq.s32.totalorder %v252, %v253
        %v270 = vsel %vm254, 1, 0
        %v271 = vsel %vm255, 1, 0
        %v272 = vsel %vm256, 1, 0
        %v273 = vsel %vm257, 1, 0
        %v274 = vsel %vm258, 1, 0
        %v275 = vsel %vm259, 1, 0
        %v276 = vsel %vm260, 1, 0
        %v277 = vsel %vm261, 1, 0
        %v278 = vsel %vm262, 1, 0
        %v279 = vsel %vm263, 1, 0
        %v280 = vsel %vm264, 1, 0
        %v281 = vsel %vm265, 1, 0
        %v282 = vsel %vm266, 1, 0
        %v283 = vsel %vm267, 1, 0
        %v284 = vsel %vm268, 1, 0
        %v285 = vsel %vm269, 1, 0
        %v286 = vcvt.s32.f32 %v270
        %v287 = vcvt.s32.f32 %v271
        %v288 = vcvt.s32.f32 %v272
        %v289 = vcvt.s32.f32 %v273
        %v290 = vcvt.s32.f32 %v274
        %v291 = vcvt.s32.f32 %v275
        %v292 = vcvt.s32.f32 %v276
        %v293 = vcvt.s32.f32 %v277
        %v294 = vcvt.s32.f32 %v278
        %v295 = vcvt.s32.f32 %v279
        %v296 = vcvt.s32.f32 %v280
        %v297 = vcvt.s32.f32 %v281
        %v298 = vcvt.s32.f32 %v282
        %v299 = vcvt.s32.f32 %v283
        %v300 = vcvt.s32.f32 %v284
        %v301 = vcvt.s32.f32 %v285
        %v302 = vld [vmem:[#allocation2] sm:$0xff]
        %v303 = vld [vmem:[#allocation2 + $0x8] sm:$0xff]
        %v304 = vld [vmem:[#allocation2 + $0x10] sm:$0xff]
        %v305 = vld [vmem:[#allocation2 + $0x18] sm:$0xff]
        %v306 = vld [vmem:[#allocation2 + $0x20] sm:$0xff]
        %v307 = vld [vmem:[#allocation2 + $0x28] sm:$0xff]
        %v308 = vld [vmem:[#allocation2 + $0x30] sm:$0xff]
        %v309 = vld [vmem:[#allocation2 + $0x38] sm:$0xff]
        %v310 = vld [vmem:[#allocation2 + $0x40] sm:$0xff]
        %v311 = vld [vmem:[#allocation2 + $0x48] sm:$0xff]
        %v312 = vld [vmem:[#allocation2 + $0x50] sm:$0xff]
        %v313 = vld [vmem:[#allocation2 + $0x58] sm:$0xff]
        %v314 = vld [vmem:[#allocation2 + $0x60] sm:$0xff]
        %v315 = vld [vmem:[#allocation2 + $0x68] sm:$0xff]
        %v316 = vld [vmem:[#allocation2 + $0x70] sm:$0xff]
        %v317 = vld [vmem:[#allocation2 + $0x78] sm:$0xff]
        %318 = vxpose.xlu0.b32.start [1/16] %v286, 128
        %319 = vxpose.xlu0.b32.cont [2/16] %v287, 128
        %320 = vxpose.xlu0.b32.cont [3/16] %v288, 128
        %321 = vxpose.xlu0.b32.cont [4/16] %v289, 128
        %322 = vxpose.xlu0.b32.cont [5/16] %v290, 128
        %323 = vxpose.xlu0.b32.cont [6/16] %v291, 128
        %324 = vxpose.xlu0.b32.cont [7/16] %v292, 128
        %325 = vxpose.xlu0.b32.cont [8/16] %v293, 128
        %326 = vxpose.xlu0.b32.cont [9/16] %v294, 128
        %327 = vxpose.xlu0.b32.cont [10/16] %v295, 128
        %328 = vxpose.xlu0.b32.cont [11/16] %v296, 128
        %329 = vxpose.xlu0.b32.cont [12/16] %v297, 128
        %330 = vxpose.xlu0.b32.cont [13/16] %v298, 128
        %331 = vxpose.xlu0.b32.cont [14/16] %v299, 128
        %332 = vxpose.xlu0.b32.cont [15/16] %v300, 128
        %333 = vxpose.xlu0.b32.end [16/16] %v301, 128
        %v334 = vpop.trf.xlu0
        %v335 = vpop.trf.xlu0
        %v336 = vpop.trf.xlu0
        %v337 = vpop.trf.xlu0
        %v338 = vpop.trf.xlu0
        %v339 = vpop.trf.xlu0
        %v340 = vpop.trf.xlu0
        %v341 = vpop.trf.xlu0
        %v342 = vpop.trf.xlu0
        %v343 = vpop.trf.xlu0
        %v344 = vpop.trf.xlu0
        %v345 = vpop.trf.xlu0
        %v346 = vpop.trf.xlu0
        %v347 = vpop.trf.xlu0
        %v348 = vpop.trf.xlu0
        %v349 = vpop.trf.xlu0
        %350 = vmatpush.msra.mxu0 %v317
        %351 = vmatpush.msra.mxu0 %v316
        %352 = vmatpush.msra.mxu0 %v315
        %353 = vmatpush.msra.mxu0 %v314
        %354 = vmatpush.msra.mxu0 %v313
        %355 = vmatpush.msra.mxu0 %v312
        %356 = vmatpush.msra.mxu0 %v311
        %357 = vmatpush.msra.mxu0 %v310
        %358 = vmatpush.msra.mxu0 %v309
        %359 = vmatpush.msra.mxu0 %v308
        %360 = vmatpush.msra.mxu0 %v307
        %361 = vmatpush.msra.mxu0 %v306
        %362 = vmatpush.msra.mxu0 %v305
        %363 = vmatpush.msra.mxu0 %v304
        %364 = vmatpush.msra.mxu0 %v303
        %365 = vmatpush.msra.mxu0 %v302
        %366 = vmatmul.f32.gmra.mxu0 %v334
        %v367 = vpop.f32.mrf.mxu0
        %v368 = vadd.f32 0.0, %v367
        %369 = vdwg.mxu0
        %370 = vst [vmem:[%s220] sm:$0xff] %v368
        %371 = vmax.xlane.f32.xlu0 %v368
        %v372 = vpop.xlane.xlu0 %371
        %v373 = vsub.f32 %v368, %v372
        %v374 = vmul.f32 %v373, 1.442695
        %v375 = vpow.pop %v374
        %376 = vadd.xlane.f32.xlu0 %v375
        %v377 = vpop.xlane.xlu0 %376
        %v378 = vlog2.pop %v377
        %v379 = vmul.f32 %v378, 0.6931472
        %v380 = vadd.f32 %v372, %v379
        %v381 = vlaneseq
        %v382 = vand.u32 %v381, 127
        %383 = vset.pattern.permute.xlu0 0
        %384 = vperm.xlu0 %383, %v235
        %v385 = vpop.permute.xlu0 %384
        %vm386 = vcmp.eq.s32.totalorder %v382, %v385
        %v387 = vsel %vm386, %v368, 0.0
        %388 = vadd.xlane.f32.xlu0 %v387
        %v389 = vpop.xlane.xlu0 %388
        %s390 = smul.u32 %s23, 8
        %v391 = vstv %s390
        %v392 = vadd.s32 %v237, %v391
        %vm393 = vcmp.lt.s32.totalorder %v392, 16
        %v394 = vsub.f32 %v380, %v389
        %v395 = vsel %vm393, %v394, 0.0
        %v396 = vrot.slane %v395, 4
        %v397 = vadd.f32 %v395, %v396
        %v398 = vrot.slane %v397, 2
        %v399 = vadd.f32 %v397, %v398
        %v400 = vrot.slane %v399, 1
        %v401 = vadd.f32 %v399, %v400
        %402 = vst [vmem:[%s226] sm:$0x1] %v401
        %s403 = sand.u32 %s104, 1
        %s404 = scalar_lea.sflag [#allocation4], %s403
        %s405 = sand.u32 %s104, 1
        %s406 = smul.addr %s405, 8
        %s407 = scalar_lea.vmem [#allocation5], %s406
        %s408 = sand.u32 %s130, 1
        %s409 = scalar_lea.sflag [#allocation7], %s408
        %s410 = sand.u32 %s130, 1
        %s411 = scalar_lea.vmem [#allocation6], %s410
        // Predicated region
        $region37: #{tpu_custom_call.1} parent=31 // pred_check
          %p412 = pneg %p114
        $region38: #{tpu_custom_call.1} parent=31 // pred_check_branch
          %414 = sbr.rel (%p412) target = $region40
        $region39: #{tpu_custom_call.1} parent=31 // pred_region
          %416 = vsyncadd %s404, 0
          %s417 = smul.addr %s23, 8
          %s418 = scalar_lea.hbm %s3, %s417
          %s420 = sshll.u32 %s407, 4
          %s421 = int_to_ptr.vmem [resolvable:$true] %s420
          %s422 = sshll.u32 %s418, 4
          %s423 = int_to_ptr.hbm [resolvable:$true] %s422
          %425 = dma.vmem_to_hbm [thread:$0]  %s421, 128, %s423, %s404
        $region40: #{tpu_custom_call.1} parent=31 // pred_fallthru
          _
        // Predicated region
        $region41: #{tpu_custom_call.1} parent=31 // pred_check
          %p426 = pneg %p140
        $region42: #{tpu_custom_call.1} parent=31 // pred_check_branch
          %428 = sbr.rel (%p426) target = $region44
        $region43: #{tpu_custom_call.1} parent=31 // pred_region
          %430 = vsyncadd %s409, 0
          %s431 = scalar_lea.hbm %s4, %s23
          %s433 = sshll.u32 %s411, 4
          %s434 = int_to_ptr.vmem [resolvable:$true] %s433
          %s435 = sshll.u32 %s431, 4
          %s436 = int_to_ptr.hbm [resolvable:$true] %s435
          %438 = dma.vmem_to_hbm [thread:$0]  %s434, 16, %s436, %s409
        $region44: #{tpu_custom_call.1} parent=31 // pred_fallthru
          _
      $region32: #{tpu_custom_call.1} parent=5 // pred_fallthru
        _
      %p439 = scmp.le.s32.totalorder 2, %s18
      // Predicated region
      $region45: #{tpu_custom_call.1} parent=5 // pred_check
        %p440 = pneg %p439
      $region46: #{tpu_custom_call.1} parent=5 // pred_check_branch
        %442 = sbr.rel (%p440) target = $region48
      $region47: #{tpu_custom_call.1} parent=5 // pred_region
        %s443 = ssub.s32 %s18, 2
        // Predicated region
        $region49: #{tpu_custom_call.1} parent=47 // pred_check
          %p444 = pneg %p120
        $region50: #{tpu_custom_call.1} parent=47 // pred_check_branch
          %446 = sbr.rel (%p444) target = $region52
        $region51: #{tpu_custom_call.1} parent=47 // pred_region
          %s447 = sand.u32 %s105, 1
          %s448 = scalar_lea.sflag [#allocation4], %s447
          %s449 = sand.u32 %s105, 1
          %s450 = smul.addr %s449, 8
          %s451 = scalar_lea.vmem [#allocation5], %s450
          %453 = dma.done %s448, 128
        $region52: #{tpu_custom_call.1} parent=47 // pred_fallthru
          _
        // Predicated region
        $region53: #{tpu_custom_call.1} parent=47 // pred_check
          %p454 = pneg %p146
        $region54: #{tpu_custom_call.1} parent=47 // pred_check_branch
          %456 = sbr.rel (%p454) target = $region56
        $region55: #{tpu_custom_call.1} parent=47 // pred_region
          %s457 = sand.u32 %s131, 1
          %s458 = scalar_lea.sflag [#allocation7], %s457
          %s459 = sand.u32 %s131, 1
          %s460 = scalar_lea.vmem [#allocation6], %s459
          %462 = dma.done %s458, 16
        $region56: #{tpu_custom_call.1} parent=47 // pred_fallthru
          _
      $region48: #{tpu_custom_call.1} parent=5 // pred_fallthru
        _
    $region6: #{tpu_custom_call.1} parent=1 // loop_footer
      %s22 = sadd.s32 1, %s18
    $region7: #{tpu_custom_call.1} parent=1 // loop_footer_branch
      %17 = sbr.rel target = $region3
    $region8: #{tpu_custom_call.1} parent=1 // loop_exit
      _
    %463 = vsyncpa [#allocation3], 1
    %s464 = scalar_lea.sflag [#allocation3], 1
    %465 = vsyncpa %s464, 1
    %466 = vsyncpa [#allocation4], 1
    %s467 = scalar_lea.sflag [#allocation4], 1
    %468 = vsyncpa %s467, 1
    %469 = vsyncpa [#allocation7], 1
    %s470 = scalar_lea.sflag [#allocation7], 1
    %471 = vsyncpa %s470, 1

</llo_original>
